<compile_context>
chip_gen: v5e
topology: v5e:2x2
jax: 0.10.0
libtpu: 0.0.40
codegen_flags: <defaults>
</compile_context>

<pallas_src>
import jax
import jax.numpy as jnp
from jax.experimental import pallas as pl
from jax.experimental.pallas import tpu as pltpu

EPSILON = 1e-6


def _round_up(n, m):
    return -(-n // m) * m


def _vmem_capacity_bytes():
    try:
        return int(pltpu.get_tpu_info().vmem_capacity_bytes)
    except Exception:
        return 64 * 1024 * 1024          # conservative (v7x-sized) fallback


def _plan(B, C, HW, x_itemsize, t_itemsize):
    """Pick lane tile T, #tiles, core split G, tiles/shard, and VMEM limit."""
    BC = B * C
    bc_pad = _round_up(BC, 8)            # VMEM sublane padding of logits block
    b_pad = _round_up(B, 8)              # VMEM sublane padding of target block
    vmem_cap = _vmem_capacity_bytes()
    # Generation-aware scoped-VMEM request: 48 MiB on v7x (64 MiB physical),
    # 64 MiB on v5e/v6e (128 MiB physical).
    vmem_limit = max(16 << 20, min(vmem_cap - (16 << 20), 64 << 20))
    buf_budget = int(vmem_limit * 0.75)  # headroom for internal scratch
    # Both inputs are double-buffered by the Pallas pipeline.
    bytes_per_lane = 2 * (bc_pad * x_itemsize + b_pad * t_itemsize)
    t_from_budget = buf_budget // bytes_per_lane
    t_block_cap = (8 << 20) // max(1, bc_pad * x_itemsize)   # ~8 MiB logits block
    hw_pad = _round_up(HW, 128)
    T = max(128, (min(t_from_budget, t_block_cap, hw_pad) // 128) * 128)
    n_total = -(-HW // T)                # number of real lane tiles
    G = 2 if n_total >= 2 else 1         # megacore split; harmless on 1-TC chips
    TPS = -(-n_total // G)               # tiles per shard (last shard may be short)
    return T, n_total, G, TPS, vmem_limit


def _make_kernel(B, C, HW, T, TPS, t_dtype):
    BC = B * C

    def kernel(x_ref, t_ref, inter_out, pred_out, tgt_out,
               inter_acc, pred_acc, tgt_acc):
        # x_ref:  (B*C, T) logits tile (native dtype), sublane-dense
        # t_ref:  (B, T)   ground-truth labels tile (caller's int dtype)
        # *_out:  (1, B*C, 1) per-shard counts, written at the shard's last tile
        # *_acc:  (B*C, 1) f32 running counts, resident across the k axis
        g = pl.program_id(0)
        k = pl.program_id(1)

        @pl.when(k == 0)
        def _init():
            inter_acc[...] = jnp.zeros_like(inter_acc)
            pred_acc[...] = jnp.zeros_like(pred_acc)
            tgt_acc[...] = jnp.zeros_like(tgt_acc)

        # Ragged-tail / ghost-tile mask: lanes >= rem are not real pixels
        # (their HBM/VMEM contents are garbage and must not contribute).
        kk = g * TPS + k                              # un-clamped global tile id
        rem = HW - kk * T                             # <= 0 on ghost tiles
        lane = jax.lax.broadcasted_iota(jnp.int32, (1, T), 1)
        valid = lane < rem                            # (1, T) bool

        x = x_ref[...]                                # (B*C, T), dense vregs
        # sigmoid(x) > 0.5  <=>  x > 0 ; out-of-range lanes forced to 0.
        pred_f = jnp.logical_and(x > 0.0, valid).astype(jnp.float32)   # (B*C, T)
        # f32 counts are exact up to 2^24 pixels per (batch, class).
        pred_acc[...] += jnp.sum(pred_f, axis=-1, keepdims=True)       # (B*C, 1)

        # Tiny (C, 1) class column; target row broadcasts against it.
        cls = jax.lax.broadcasted_iota(jnp.int32, (C, 1), 0).astype(t_dtype)
        for b in range(B):                            # static loop, B is small
            tb = t_ref[b:b + 1, :]                    # (1, T), native int dtype
            tb = jnp.where(valid, tb, C)              # sentinel C matches no class
            tgt_f = (tb == cls).astype(jnp.float32)   # (C, T) one-hot
            pb = pred_f[b * C:(b + 1) * C, :]         # (C, T) static f32 slice
            tgt_acc[b * C:(b + 1) * C, :] += jnp.sum(
                tgt_f, axis=-1, keepdims=True)
            inter_acc[b * C:(b + 1) * C, :] += jnp.sum(
                pb * tgt_f, axis=-1, keepdims=True)

        @pl.when(k == pl.num_programs(1) - 1)
        def _finalize():
            inter_out[...] = inter_acc[...][None]
            pred_out[...] = pred_acc[...][None]
            tgt_out[...] = tgt_acc[...][None]

    return kernel


@jax.jit
def multi_dice_loss(logits, target, weights):
    """logits: (B, C, H, W) float; target: (B, H, W) int; weights: (C, 1) normalized.

    Returns (weighted_loss: shape (1,), per_class_loss: shape (C,))."""
    B, C, H, W = logits.shape
    HW = H * W
    BC = B * C

    # Layout plumbing only: both reshapes are free on contiguous NCHW data.
    x = logits.reshape(BC, HW)
    t = target.reshape(B, HW)             # streamed at the caller's int dtype

    T, n_total, G, TPS, vmem_limit = _plan(
        B, C, HW,
        jnp.dtype(logits.dtype).itemsize, jnp.dtype(target.dtype).itemsize)

    # Shard g owns global tiles [g*TPS, (g+1)*TPS); ghost tiles are clamped to
    # the last real tile (cheap re-read) and fully masked in-kernel.
    idx = lambda g, k: (0, jnp.minimum(g * TPS + k, n_total - 1))
    kernel = _make_kernel(B, C, HW, T, TPS, jnp.dtype(target.dtype))

    counts = pl.pallas_call(
        kernel,
        out_shape=tuple(jax.ShapeDtypeStruct((G, BC, 1), jnp.float32)
                        for _ in range(3)),
        grid_spec=pltpu.PrefetchScalarGridSpec(
            num_scalar_prefetch=0,
            grid=(G, TPS),
            in_specs=[
                pl.BlockSpec((BC, T), idx),   # logits tile, sublane-dense
                pl.BlockSpec((B, T), idx),    # label tile
            ],
            out_specs=[pl.BlockSpec((1, BC, 1), lambda g, k: (g, 0, 0))] * 3,
            scratch_shapes=[pltpu.VMEM((BC, 1), jnp.float32)] * 3,
        ),
        compiler_params=pltpu.CompilerParams(
            dimension_semantics=("parallel", "arbitrary"),
            vmem_limit_bytes=vmem_limit,
        ),
    )(x, t)

    # Tiny finalize on (B, C) scalars: dice, zero-target masking, batch mean.
    inter, pred_a, tgt_a = (jnp.sum(c, axis=0).reshape(B, C) for c in counts)
    batch_loss = 1.0 - 2.0 * inter / (pred_a + tgt_a + 2.0 * EPSILON)
    batch_loss = jnp.where(tgt_a == 0.0, 0.0, batch_loss)
    per_class = jnp.mean(batch_loss, axis=0)                       # (C,)
    weighted = jnp.sum(per_class * weights.reshape(-1)).reshape(1)
    return weighted, per_class


def _reference(logits, target, weights):
    """Pure-JAX reference mirroring the PyTorch forward."""
    B, C, H, W = logits.shape
    s = jax.nn.sigmoid(logits.astype(jnp.float32))
    losses = []
    for i in range(C):
        pred = (s[:, i] > 0.5).astype(jnp.float32).reshape(B, -1)
        tgt = (target == i).astype(jnp.float32).reshape(B, -1)
        inter = jnp.sum(pred * tgt, axis=1)
        pa = jnp.sum(pred, axis=1)
        ta = jnp.sum(tgt, axis=1)
        bl = 1.0 - 2.0 * inter / (pa + ta + 2.0 * EPSILON)
        bl = jnp.where(ta == 0.0, 0.0, bl)
        losses.append(jnp.mean(bl))
    per = jnp.stack(losses)
    return jnp.sum(per * weights.reshape(-1)).reshape(1), per


if __name__ == "__main__":
    B, C, H, W = 2, 4, 16, 16

    key = jax.random.PRNGKey(0)
    k_logits, k_target = jax.random.split(key)
    logits = jax.random.normal(k_logits, (B, C, H, W), dtype=jnp.float32)
    target = jax.random.randint(k_target, (B, H, W), 0, C, dtype=jnp.int32)

    # Deterministic weights (as in __init__): user list, unsqueezed, normalized.
    raw_w = jnp.array([1.0, 2.0, 3.0, 4.0], dtype=jnp.float32)
    weights = (raw_w / raw_w.sum()).reshape(C, 1)

    weighted, per_class = multi_dice_loss(logits, target, weights)
    jax.block_until_ready((weighted, per_class))

    ref_weighted, ref_per_class = _reference(logits, target, weights)
    assert jnp.allclose(per_class, ref_per_class, atol=1e-5, rtol=1e-5), (
        per_class, ref_per_class)
    assert jnp.allclose(weighted, ref_weighted, atol=1e-5, rtol=1e-5), (
        weighted, ref_weighted)

    print("KERNEL_OK")
</pallas_src>

<mosaic_0001>
module attributes {stable_mosaic.version = 11 : i64} {
  func.func @kernel(%arg0: i32, %arg1: i32, %arg2: memref<8x256xf32, #tpu.memory_space<vmem>>, %arg3: memref<2x256xi32, #tpu.memory_space<vmem>>, %arg4: memref<1x8x1xf32, #tpu.memory_space<vmem>>, %arg5: memref<1x8x1xf32, #tpu.memory_space<vmem>>, %arg6: memref<1x8x1xf32, #tpu.memory_space<vmem>>, %arg7: memref<8x1xf32, #tpu.memory_space<vmem>>, %arg8: memref<8x1xf32, #tpu.memory_space<vmem>>, %arg9: memref<8x1xf32, #tpu.memory_space<vmem>>) attributes {dimension_semantics = [#tpu.dimension_semantics<parallel>, #tpu.dimension_semantics<arbitrary>], iteration_bounds = array<i64: 1, 1>, scalar_prefetch = 0 : i64, scratch_operands = 3 : i64, tpu.core_type = #tpu.core_type<tc>, window_params = [{transform_indices = @transform_0, window_bounds = array<i64: 8, 256>}, {transform_indices = @transform_1, window_bounds = array<i64: 2, 256>}, {transform_indices = @transform_2, window_bounds = array<i64: 1, 8, 1>}, {transform_indices = @transform_3, window_bounds = array<i64: 1, 8, 1>}, {transform_indices = @transform_4, window_bounds = array<i64: 1, 8, 1>}]} {
    %c0_i32 = arith.constant 0 : i32
    %0 = arith.cmpi eq, %arg1, %c0_i32 : i32
    %1 = arith.extui %0 : i1 to i32
    %c0_i32_0 = arith.constant 0 : i32
    %2 = arith.cmpi ne, %1, %c0_i32_0 : i32
    scf.if %2 {
      %cst_33 = arith.constant 0.000000e+00 : f32
      %66 = vector.broadcast %cst_33 : f32 to vector<8x1xf32>
      %c0_34 = arith.constant 0 : index
      %c0_35 = arith.constant 0 : index
      %67 = vector.load %arg7[%c0_34, %c0_35] : memref<8x1xf32, #tpu.memory_space<vmem>>, vector<8x1xf32>
      tpu.vector_store %arg7[%c0_34, %c0_35], %66 {strides = array<i32>} : memref<8x1xf32, #tpu.memory_space<vmem>>, vector<8x1xf32>,
      %cst_36 = arith.constant 0.000000e+00 : f32
      %68 = vector.broadcast %cst_36 : f32 to vector<8x1xf32>
      %c0_37 = arith.constant 0 : index
      %c0_38 = arith.constant 0 : index
      %69 = vector.load %arg8[%c0_37, %c0_38] : memref<8x1xf32, #tpu.memory_space<vmem>>, vector<8x1xf32>
      tpu.vector_store %arg8[%c0_37, %c0_38], %68 {strides = array<i32>} : memref<8x1xf32, #tpu.memory_space<vmem>>, vector<8x1xf32>,
      %cst_39 = arith.constant 0.000000e+00 : f32
      %70 = vector.broadcast %cst_39 : f32 to vector<8x1xf32>
      %c0_40 = arith.constant 0 : index
      %c0_41 = arith.constant 0 : index
      %71 = vector.load %arg9[%c0_40, %c0_41] : memref<8x1xf32, #tpu.memory_space<vmem>>, vector<8x1xf32>
      tpu.vector_store %arg9[%c0_40, %c0_41], %70 {strides = array<i32>} : memref<8x1xf32, #tpu.memory_space<vmem>>, vector<8x1xf32>,
    } else {
    }
    %c1_i32 = arith.constant 1 : i32
    %3 = arith.muli %arg0, %c1_i32 : i32
    %4 = arith.addi %3, %arg1 : i32
    %c256_i32 = arith.constant 256 : i32
    %5 = arith.muli %4, %c256_i32 : i32
    %c256_i32_1 = arith.constant 256 : i32
    %6 = arith.subi %c256_i32_1, %5 : i32
    %7 = tpu.iota {dimensions = array<i32: 1>} : vector<1x256xi32>
    %8 = vector.broadcast %6 : i32 to vector<1x256xi32>
    %9 = arith.cmpi slt, %7, %8 : vector<1x256xi32>
    %c0 = arith.constant 0 : index
    %c0_2 = arith.constant 0 : index
    %10 = vector.load %arg2[%c0, %c0_2] : memref<8x256xf32, #tpu.memory_space<vmem>>, vector<8x256xf32>
    %cst = arith.constant 0.000000e+00 : f32
    %11 = vector.broadcast %cst : f32 to vector<8x256xf32>
    %12 = arith.cmpf ogt, %10, %11 : vector<8x256xf32>
    %13 = vector.broadcast %9 : vector<1x256xi1> to vector<8x256xi1>
    %14 = arith.andi %12, %13 : vector<8x256xi1>
    %15 = arith.extui %14 : vector<8x256xi1> to vector<8x256xi32>
    %16 = arith.sitofp %15 : vector<8x256xi32> to vector<8x256xf32>
    %c0_3 = arith.constant 0 : index
    %c0_4 = arith.constant 0 : index
    %17 = vector.load %arg8[%c0_3, %c0_4] : memref<8x1xf32, #tpu.memory_space<vmem>>, vector<8x1xf32>
    %cst_5 = arith.constant dense<0.000000e+00> : vector<8xf32>
    %18 = vector.multi_reduction <add>, %16, %cst_5 [1] : vector<8x256xf32> to vector<8xf32>
    %19 = vector.shape_cast %18 : vector<8xf32> to vector<8x1xf32>
    %20 = arith.addf %17, %19 : vector<8x1xf32>
    %c0_6 = arith.constant 0 : index
    %c0_7 = arith.constant 0 : index
    %21 = vector.load %arg8[%c0_6, %c0_7] : memref<8x1xf32, #tpu.memory_space<vmem>>, vector<8x1xf32>
    tpu.vector_store %arg8[%c0_6, %c0_7], %20 {strides = array<i32>} : memref<8x1xf32, #tpu.memory_space<vmem>>, vector<8x1xf32>,
    %22 = tpu.iota {dimensions = array<i32: 0>} : vector<4x1xi32>
    %c0_8 = arith.constant 0 : index
    %c0_9 = arith.constant 0 : index
    %23 = vector.load %arg3[%c0_8, %c0_9] : memref<2x256xi32, #tpu.memory_space<vmem>>, vector<1x256xi32>
    %c4_i32 = arith.constant 4 : i32
    %24 = vector.broadcast %c4_i32 : i32 to vector<1x256xi32>
    %25 = arith.select %9, %23, %24 : vector<1x256xi1>, vector<1x256xi32>
    %26 = vector.broadcast %25 : vector<1x256xi32> to vector<4x256xi32>
    %27 = vector.broadcast %22 : vector<4x1xi32> to vector<4x256xi32>
    %28 = arith.cmpi eq, %26, %27 : vector<4x256xi32>
    %29 = arith.extui %28 : vector<4x256xi1> to vector<4x256xi32>
    %30 = arith.sitofp %29 : vector<4x256xi32> to vector<4x256xf32>
    %31 = vector.extract_strided_slice %16 {offsets = [0, 0], sizes = [4, 256], strides = [1, 1]} : vector<8x256xf32> to vector<4x256xf32>
    %c0_10 = arith.constant 0 : index
    %c0_11 = arith.constant 0 : index
    %32 = vector.load %arg9[%c0_10, %c0_11] : memref<8x1xf32, #tpu.memory_space<vmem>>, vector<4x1xf32>
    %cst_12 = arith.constant dense<0.000000e+00> : vector<4xf32>
    %33 = vector.multi_reduction <add>, %30, %cst_12 [1] : vector<4x256xf32> to vector<4xf32>
    %34 = vector.shape_cast %33 : vector<4xf32> to vector<4x1xf32>
    %35 = arith.addf %32, %34 : vector<4x1xf32>
    %c0_13 = arith.constant 0 : index
    %c0_14 = arith.constant 0 : index
    %36 = vector.load %arg9[%c0_13, %c0_14] : memref<8x1xf32, #tpu.memory_space<vmem>>, vector<4x1xf32>
    tpu.vector_store %arg9[%c0_13, %c0_14], %35 {strides = array<i32>} : memref<8x1xf32, #tpu.memory_space<vmem>>, vector<4x1xf32>,
    %c0_15 = arith.constant 0 : index
    %c0_16 = arith.constant 0 : index
    %37 = vector.load %arg7[%c0_15, %c0_16] : memref<8x1xf32, #tpu.memory_space<vmem>>, vector<4x1xf32>
    %38 = arith.mulf %31, %30 : vector<4x256xf32>
    %cst_17 = arith.constant dense<0.000000e+00> : vector<4xf32>
    %39 = vector.multi_reduction <add>, %38, %cst_17 [1] : vector<4x256xf32> to vector<4xf32>
    %40 = vector.shape_cast %39 : vector<4xf32> to vector<4x1xf32>
    %41 = arith.addf %37, %40 : vector<4x1xf32>
    %c0_18 = arith.constant 0 : index
    %c0_19 = arith.constant 0 : index
    %42 = vector.load %arg7[%c0_18, %c0_19] : memref<8x1xf32, #tpu.memory_space<vmem>>, vector<4x1xf32>
    tpu.vector_store %arg7[%c0_18, %c0_19], %41 {strides = array<i32>} : memref<8x1xf32, #tpu.memory_space<vmem>>, vector<4x1xf32>,
    %c1 = arith.constant 1 : index
    %c0_20 = arith.constant 0 : index
    %43 = vector.load %arg3[%c1, %c0_20] : memref<2x256xi32, #tpu.memory_space<vmem>>, vector<1x256xi32>
    %c4_i32_21 = arith.constant 4 : i32
    %44 = vector.broadcast %c4_i32_21 : i32 to vector<1x256xi32>
    %45 = arith.select %9, %43, %44 : vector<1x256xi1>, vector<1x256xi32>
    %46 = vector.broadcast %45 : vector<1x256xi32> to vector<4x256xi32>
    %47 = vector.broadcast %22 : vector<4x1xi32> to vector<4x256xi32>
    %48 = arith.cmpi eq, %46, %47 : vector<4x256xi32>
    %49 = arith.extui %48 : vector<4x256xi1> to vector<4x256xi32>
    %50 = arith.sitofp %49 : vector<4x256xi32> to vector<4x256xf32>
    %51 = vector.extract_strided_slice %16 {offsets = [4, 0], sizes = [4, 256], strides = [1, 1]} : vector<8x256xf32> to vector<4x256xf32>
    %c4 = arith.constant 4 : index
    %c0_22 = arith.constant 0 : index
    %52 = vector.load %arg9[%c4, %c0_22] : memref<8x1xf32, #tpu.memory_space<vmem>>, vector<4x1xf32>
    %cst_23 = arith.constant dense<0.000000e+00> : vector<4xf32>
    %53 = vector.multi_reduction <add>, %50, %cst_23 [1] : vector<4x256xf32> to vector<4xf32>
    %54 = vector.shape_cast %53 : vector<4xf32> to vector<4x1xf32>
    %55 = arith.addf %52, %54 : vector<4x1xf32>
    %c4_24 = arith.constant 4 : index
    %c0_25 = arith.constant 0 : index
    %56 = vector.load %arg9[%c4_24, %c0_25] : memref<8x1xf32, #tpu.memory_space<vmem>>, vector<4x1xf32>
    tpu.vector_store %arg9[%c4_24, %c0_25], %55 {strides = array<i32>} : memref<8x1xf32, #tpu.memory_space<vmem>>, vector<4x1xf32>,
    %c4_26 = arith.constant 4 : index
    %c0_27 = arith.constant 0 : index
    %57 = vector.load %arg7[%c4_26, %c0_27] : memref<8x1xf32, #tpu.memory_space<vmem>>, vector<4x1xf32>
    %58 = arith.mulf %51, %50 : vector<4x256xf32>
    %cst_28 = arith.constant dense<0.000000e+00> : vector<4xf32>
    %59 = vector.multi_reduction <add>, %58, %cst_28 [1] : vector<4x256xf32> to vector<4xf32>
    %60 = vector.shape_cast %59 : vector<4xf32> to vector<4x1xf32>
    %61 = arith.addf %57, %60 : vector<4x1xf32>
    %c4_29 = arith.constant 4 : index
    %c0_30 = arith.constant 0 : index
    %62 = vector.load %arg7[%c4_29, %c0_30] : memref<8x1xf32, #tpu.memory_space<vmem>>, vector<4x1xf32>
    tpu.vector_store %arg7[%c4_29, %c0_30], %61 {strides = array<i32>} : memref<8x1xf32, #tpu.memory_space<vmem>>, vector<4x1xf32>,
    %c0_i32_31 = arith.constant 0 : i32
    %63 = arith.cmpi eq, %arg1, %c0_i32_31 : i32
    %64 = arith.extui %63 : i1 to i32
    %c0_i32_32 = arith.constant 0 : i32
    %65 = arith.cmpi ne, %64, %c0_i32_32 : i32
    scf.if %65 {
      %c0_33 = arith.constant 0 : index
      %c0_34 = arith.constant 0 : index
      %66 = vector.load %arg7[%c0_33, %c0_34] : memref<8x1xf32, #tpu.memory_space<vmem>>, vector<8x1xf32>
      %67 = vector.shape_cast %66 : vector<8x1xf32> to vector<1x8x1xf32>
      %c0_35 = arith.constant 0 : index
      %c0_36 = arith.constant 0 : index
      %c0_37 = arith.constant 0 : index
      %68 = vector.load %arg4[%c0_35, %c0_36, %c0_37] : memref<1x8x1xf32, #tpu.memory_space<vmem>>, vector<1x8x1xf32>
      tpu.vector_store %arg4[%c0_35, %c0_36, %c0_37], %67 {strides = array<i32>} : memref<1x8x1xf32, #tpu.memory_space<vmem>>, vector<1x8x1xf32>,
      %c0_38 = arith.constant 0 : index
      %c0_39 = arith.constant 0 : index
      %69 = vector.load %arg8[%c0_38, %c0_39] : memref<8x1xf32, #tpu.memory_space<vmem>>, vector<8x1xf32>
      %70 = vector.shape_cast %69 : vector<8x1xf32> to vector<1x8x1xf32>
      %c0_40 = arith.constant 0 : index
      %c0_41 = arith.constant 0 : index
      %c0_42 = arith.constant 0 : index
      %71 = vector.load %arg5[%c0_40, %c0_41, %c0_42] : memref<1x8x1xf32, #tpu.memory_space<vmem>>, vector<1x8x1xf32>
      tpu.vector_store %arg5[%c0_40, %c0_41, %c0_42], %70 {strides = array<i32>} : memref<1x8x1xf32, #tpu.memory_space<vmem>>, vector<1x8x1xf32>,
      %c0_43 = arith.constant 0 : index
      %c0_44 = arith.constant 0 : index
      %72 = vector.load %arg9[%c0_43, %c0_44] : memref<8x1xf32, #tpu.memory_space<vmem>>, vector<8x1xf32>
      %73 = vector.shape_cast %72 : vector<8x1xf32> to vector<1x8x1xf32>
      %c0_45 = arith.constant 0 : index
      %c0_46 = arith.constant 0 : index
      %c0_47 = arith.constant 0 : index
      %74 = vector.load %arg6[%c0_45, %c0_46, %c0_47] : memref<1x8x1xf32, #tpu.memory_space<vmem>>, vector<1x8x1xf32>
      tpu.vector_store %arg6[%c0_45, %c0_46, %c0_47], %73 {strides = array<i32>} : memref<1x8x1xf32, #tpu.memory_space<vmem>>, vector<1x8x1xf32>,
    } else {
    }
    return
  }
  func.func @transform_0(%arg0: i32, %arg1: i32) -> (i32, i32) {
    %c1_i32 = arith.constant 1 : i32
    %0 = arith.muli %arg0, %c1_i32 : i32
    %1 = arith.addi %0, %arg1 : i32
    %c0_i32 = arith.constant 0 : i32
    %2 = arith.minsi %1, %c0_i32 : i32
    %c0_i32_0 = arith.constant 0 : i32
    %c0_i32_1 = arith.constant 0 : i32
    return %c0_i32_0, %2 : i32, i32
  }
  func.func @transform_1(%arg0: i32, %arg1: i32) -> (i32, i32) {
    %c1_i32 = arith.constant 1 : i32
    %0 = arith.muli %arg0, %c1_i32 : i32
    %1 = arith.addi %0, %arg1 : i32
    %c0_i32 = arith.constant 0 : i32
    %2 = arith.minsi %1, %c0_i32 : i32
    %c0_i32_0 = arith.constant 0 : i32
    %c0_i32_1 = arith.constant 0 : i32
    return %c0_i32_0, %2 : i32, i32
  }
  func.func @transform_2(%arg0: i32, %arg1: i32) -> (i32, i32, i32) {
    %c0_i32 = arith.constant 0 : i32
    %c0_i32_0 = arith.constant 0 : i32
    %c0_i32_1 = arith.constant 0 : i32
    return %arg0, %c0_i32, %c0_i32_0 : i32, i32, i32
  }
  func.func @transform_3(%arg0: i32, %arg1: i32) -> (i32, i32, i32) {
    %c0_i32 = arith.constant 0 : i32
    %c0_i32_0 = arith.constant 0 : i32
    %c0_i32_1 = arith.constant 0 : i32
    return %arg0, %c0_i32, %c0_i32_0 : i32, i32, i32
  }
  func.func @transform_4(%arg0: i32, %arg1: i32) -> (i32, i32, i32) {
    %c0_i32 = arith.constant 0 : i32
    %c0_i32_0 = arith.constant 0 : i32
    %c0_i32_1 = arith.constant 0 : i32
    return %arg0, %c0_i32, %c0_i32_0 : i32, i32, i32
  }
}

</mosaic_0001>

<llo_original>
// kernel: multi_dice_loss.1
$region0: #{multi_dice_loss.1}
  #allocation0 [shape = 'u32[]', space=smem, size = 0x4, offset = 0x4, fixed_abs, tag = 'smem constant byte address 0x4 - core index']
  #allocation1 [shape = 'u32[72,128]{1,0:T(1,128)}', space=vmem, size = 0x9000, scoped, tag = 'internal scratch']
  #allocation2 [shape = 'f32[8,1]{1,0:T(8,128)}', space=vmem, size = 0x1000, scoped, tag = 'scratch operand']
  #allocation3 [shape = 'f32[8,1]{1,0:T(8,128)}', space=vmem, size = 0x1000, scoped, tag = 'scratch operand']
  #allocation4 [shape = 'f32[8,1]{1,0:T(8,128)}', space=vmem, size = 0x1000, scoped, tag = 'scratch operand']
  %s0 = inlined_call_operand.vmem [shape: f32[8,256], index: 0, kind: input, shape index: {}]
  %s1 = inlined_call_operand.vmem [shape: s32[2,256], index: 1, kind: input, shape index: {}]
  %s2 = inlined_call_operand.vmem [shape: f32[1,8,1], index: 2, kind: output, shape index: {0}]
  %s3 = inlined_call_operand.vmem [shape: f32[1,8,1], index: 3, kind: output, shape index: {1}]
  %s4 = inlined_call_operand.vmem [shape: f32[1,8,1], index: 4, kind: output, shape index: {2}]
  %5 = xla_tuple %s2, %s3, %s4
  %s6 = sld [smem:[#allocation0]]
  $region42: #{multi_dice_loss.1} parent=0
    _
  %s8 = ssub.s32 1, %s6
  %s9 = scalar_select 0, %s8, %s6
  // Predicated region
  $region2: #{multi_dice_loss.1} parent=0 // pred_check
    _
  $region3: #{multi_dice_loss.1} parent=0 // pred_check_branch
    %11 = sbr.rel (0) target = $region5
  $region4: #{multi_dice_loss.1} parent=0 // pred_region
    %s12 = sadd.s32 0, 0
    %p13 = scmp.lt.s32.totalorder %s12, 0
    %s14 = scalar_select %p13, %s12, 0
    %s15 = smul.u32 2, %s14
    %p16 = scmp.lt.s32.totalorder %s15, 1
    %s17 = scalar_select %p16, %s15, 1
    %s18 = smul.addr %s17, 8
    %s19 = scalar_lea.vmem %s0, %s18
    %s20 = sadd.s32 0, 0
    %p21 = scmp.lt.s32.totalorder %s20, 0
    %s22 = scalar_select %p21, %s20, 0
    %s23 = smul.u32 2, %s22
  $region5: #{multi_dice_loss.1} parent=0 // pred_fallthru
    _
  // Predicated region
  $region6: #{multi_dice_loss.1} parent=0 // pred_check
    _
  $region7: #{multi_dice_loss.1} parent=0 // pred_check_branch
    %25 = sbr.rel (0) target = $region9
  $region8: #{multi_dice_loss.1} parent=0 // pred_region
    %s26 = sadd.s32 0, 0
    %p27 = scmp.lt.s32.totalorder %s26, 0
    %s28 = scalar_select %p27, %s26, 0
    %s29 = smul.u32 2, %s28
    %p30 = scmp.lt.s32.totalorder %s29, 1
    %s31 = scalar_select %p30, %s29, 1
    %s32 = smul.addr %s31, 2
    %s33 = scalar_lea.vmem %s1, %s32
    %s34 = sadd.s32 0, 0
    %p35 = scmp.lt.s32.totalorder %s34, 0
    %s36 = scalar_select %p35, %s34, 0
    %s37 = smul.u32 2, %s36
  $region9: #{multi_dice_loss.1} parent=0 // pred_fallthru
    _
  %s38 = sadd.s32 0, 0
  %p39 = scmp.lt.s32.totalorder %s38, 0
  %s40 = scalar_select %p39, %s38, 0
  %s41 = smul.u32 2, %s40
  %p42 = scmp.lt.s32.totalorder %s41, 1
  %s43 = scalar_select %p42, %s41, 1
  %s44 = smul.addr %s43, 8
  %s45 = scalar_lea.vmem %s0, %s44
  %s46 = sadd.s32 0, 0
  %p47 = scmp.lt.s32.totalorder %s46, 0
  %s48 = scalar_select %p47, %s46, 0
  %s49 = smul.u32 2, %s48
  %p50 = scmp.lt.s32.totalorder %s49, 1
  %s51 = scalar_select %p50, %s49, 1
  %s52 = smul.addr %s51, 2
  %s53 = scalar_lea.vmem %s1, %s52
  %s54 = sadd.s32 0, 0
  %p55 = scmp.lt.s32.totalorder %s54, 0
  %s56 = scalar_select %p55, %s54, 0
  %s57 = smul.u32 2, %s56
  %p58 = scmp.lt.s32.totalorder %s57, 1
  %s59 = scalar_select %p58, %s57, 1
  %s60 = smul.addr %s59, 8
  %s61 = scalar_lea.vmem %s0, %s60
  %s62 = sadd.s32 0, 0
  %p63 = scmp.lt.s32.totalorder %s62, 0
  %s64 = scalar_select %p63, %s62, 0
  %s65 = smul.u32 2, %s64
  %s66 = sadd.s32 0, 0
  %p67 = scmp.lt.s32.totalorder %s66, 0
  %s68 = scalar_select %p67, %s66, 0
  %s69 = smul.u32 2, %s68
  %p70 = scmp.lt.s32.totalorder %s69, 1
  %s71 = scalar_select %p70, %s69, 1
  %s72 = smul.addr %s71, 2
  %s73 = scalar_lea.vmem %s1, %s72
  %s74 = sadd.s32 0, 0
  %p75 = scmp.lt.s32.totalorder %s74, 0
  %s76 = scalar_select %p75, %s74, 0
  %s77 = smul.u32 2, %s76
  %p78 = scmp.eq.s32.totalorder 0, 0
  // Predicated region
  $region10: #{multi_dice_loss.1} parent=0 // pred_check
    %p79 = pneg %p78
  $region11: #{multi_dice_loss.1} parent=0 // pred_check_branch
    %81 = sbr.rel (%p79) target = $region13
  $region12: #{multi_dice_loss.1} parent=0 // pred_region
    %vm82 = vcmask 7168
    %83 = vst.msk [vmem:[#allocation2] sm:$0xff] %vm82, 0.0
    %84 = vst.msk [vmem:[#allocation3] sm:$0xff] %vm82, 0.0
    %85 = vst.msk [vmem:[#allocation4] sm:$0xff] %vm82, 0.0
  $region13: #{multi_dice_loss.1} parent=0 // pred_fallthru
    _
  %s86 = sadd.s32 0, 0
  %s87 = smul.u32 %s86, 256
  %s88 = ssub.s32 256, %s87
  %v89 = vlaneseq
  %v90 = vand.u32 %v89, 127
  %v91 = vadd.s32 %v90, 128
  %v92 = vstv %s88
  %vm93 = vcmp.lt.s32.totalorder %v90, %v92
  %vm94 = vcmp.lt.s32.totalorder %v91, %v92
  %v95 = vld [vmem:[%s61] sm:$0xff]
  %v96 = vld [vmem:[%s61 + $0x8] sm:$0xff]
  %vm97 = vcmp.gt.f32.partialorder %v95, 0.0
  %vm98 = vcmp.gt.f32.partialorder %v96, 0.0
  %v99 = vsel %vm93, 1, 0
  %v100 = vsel %vm94, 1, 0
  %vm101 = vcmp.eq.s32.totalorder %v99, 1
  %vm102 = vcmp.eq.s32.totalorder %v100, 1
  %vm103 = vmand %vm97, %vm101
  %vm104 = vmand %vm98, %vm102
  %v105 = vsel %vm103, 1, 0
  %v106 = vsel %vm104, 1, 0
  %v107 = vcvt.s32.f32 %v105
  %v108 = vcvt.s32.f32 %v106
  %v109 = vld [vmem:[#allocation3] sm:$0xff]
  %v110 = vadd.f32 %v107, %v108
  %111 = vadd.xlane.f32.xlu0 %v110
  %v112 = vpop.xlane.xlu0 %111
  %v113 = vadd.f32 %v109, %v112
  %vm114 = vcmask 7168
  %115 = vst.msk [vmem:[#allocation3] sm:$0xff] %vm114, %v113
  %v116 = vlaneseq
  %v117 = vshrl.u32 %v116, 7
  %v118 = vld [vmem:[%s73] ss:$2 sm:$0x3]
  %v119 = vperm.slane %v118, 0
  %v120 = vperm.slane %v118, 1
  %v121 = vsel %vm93, %v119, 4
  %v122 = vsel %vm94, %v120, 4
  %v123 = vperm.slane %v121, 0
  %v124 = vperm.slane %v122, 0
  %vm125 = vcmp.eq.s32.totalorder %v123, %v117
  %vm126 = vcmp.eq.s32.totalorder %v124, %v117
  %v127 = vsel %vm125, 1, 0
  %v128 = vsel %vm126, 1, 0
  %v129 = vcvt.s32.f32 %v127
  %v130 = vcvt.s32.f32 %v128
  %v131 = vld [vmem:[#allocation4] sm:$0xf]
  %vm132 = vcmask 1043456
  %v133 = vsel %vm132, %v129, 0.0
  %v134 = vsel %vm132, %v130, 0.0
  %v135 = vadd.f32 %v133, %v134
  %136 = vadd.xlane.f32.xlu0 %v135
  %v137 = vpop.xlane.xlu0 %136
  %v138 = vadd.f32 %v131, %v137
  %vm139 = vcmask 3072
  %140 = vst.msk [vmem:[#allocation4] sm:$0xf] %vm139, %v138
  %v141 = vld [vmem:[#allocation2] sm:$0xf]
  %v142 = vmul.f32 %v107, %v129
  %v143 = vmul.f32 %v108, %v130
  %v144 = vsel %vm132, %v142, 0.0
  %v145 = vsel %vm132, %v143, 0.0
  %v146 = vadd.f32 %v144, %v145
  %147 = vadd.xlane.f32.xlu0 %v146
  %v148 = vpop.xlane.xlu0 %147
  %v149 = vadd.f32 %v141, %v148
  %150 = vst.msk [vmem:[#allocation2] sm:$0xf] %vm139, %v149
  %s151 = scalar_lea.vmem %s73, 1
  %v152 = vld [vmem:[%s151] ss:$2 sm:$0x3]
  %v153 = vperm.slane %v152, 0
  %v154 = vperm.slane %v152, 1
  %v155 = vsel %vm93, %v153, 4
  %v156 = vsel %vm94, %v154, 4
  %v157 = vperm.slane %v155, 0
  %v158 = vperm.slane %v156, 0
  %vm159 = vcmp.eq.s32.totalorder %v157, %v117
  %vm160 = vcmp.eq.s32.totalorder %v158, %v117
  %v161 = vsel %vm159, 1, 0
  %v162 = vsel %vm160, 1, 0
  %v163 = vcvt.s32.f32 %v161
  %v164 = vcvt.s32.f32 %v162
  %v165 = vld [vmem:[#allocation4 + $0x4] sm:$0xf]
  %v166 = vsel %vm132, %v163, 0.0
  %v167 = vsel %vm132, %v164, 0.0
  %v168 = vadd.f32 %v166, %v167
  %169 = vadd.xlane.f32.xlu0 %v168
  %v170 = vpop.xlane.xlu0 %169
  %v171 = vadd.f32 %v165, %v170
  %172 = vst.msk [vmem:[#allocation4 + $0x4] sm:$0xf] %vm139, %v171
  %v173 = vld [vmem:[#allocation2 + $0x4] sm:$0xf]
  %v176 = vrot.slane %v163, 4
  %v177 = vrot.slane %v164, 4
  %v180 = vmul.f32 %v107, %v176
  %v181 = vmul.f32 %v108, %v177
  %vm182 = vcmask 1047556
  %v183 = vsel %vm182, %v180, 0.0
  %v184 = vsel %vm182, %v181, 0.0
  %v185 = vadd.f32 %v183, %v184
  %186 = vadd.xlane.f32.xlu0 %v185
  %v187 = vpop.xlane.xlu0 %186
  %v189 = vrot.slane %v187, 4
  %v191 = vadd.f32 %v173, %v189
  %192 = vst.msk [vmem:[#allocation2 + $0x4] sm:$0xf] %vm139, %v191
  // Predicated region
  $region14: #{multi_dice_loss.1} parent=0 // pred_check
    %p193 = pneg %p78
  $region15: #{multi_dice_loss.1} parent=0 // pred_check_branch
    %195 = sbr.rel (%p193) target = $region17
  $region16: #{multi_dice_loss.1} parent=0 // pred_region
    %v196 = vld [vmem:[#allocation2] sm:$0xff]
    %197 = vst.msk [vmem:[%s2] sm:$0xff] %vm114, %v196
    %v198 = vld [vmem:[#allocation3] sm:$0xff]
    %199 = vst.msk [vmem:[%s3] sm:$0xff] %vm114, %v198
    %v200 = vld [vmem:[#allocation4] sm:$0xff]
    %201 = vst.msk [vmem:[%s4] sm:$0xff] %vm114, %v200
  $region17: #{multi_dice_loss.1} parent=0 // pred_fallthru
    _
  // Predicated region
  $region18: #{multi_dice_loss.1} parent=0 // pred_check
    _
  $region19: #{multi_dice_loss.1} parent=0 // pred_check_branch
    %203 = sbr.rel (0) target = $region21
  $region20: #{multi_dice_loss.1} parent=0 // pred_region
    _
  $region21: #{multi_dice_loss.1} parent=0 // pred_fallthru
    _
  // Predicated region
  $region22: #{multi_dice_loss.1} parent=0 // pred_check
    _
  $region23: #{multi_dice_loss.1} parent=0 // pred_check_branch
    %205 = sbr.rel (0) target = $region25
  $region24: #{multi_dice_loss.1} parent=0 // pred_region
    _
  $region25: #{multi_dice_loss.1} parent=0 // pred_fallthru
    _
  // Predicated region
  $region26: #{multi_dice_loss.1} parent=0 // pred_check
    _
  $region27: #{multi_dice_loss.1} parent=0 // pred_check_branch
    %207 = sbr.rel (0) target = $region29
  $region28: #{multi_dice_loss.1} parent=0 // pred_region
    _
  $region29: #{multi_dice_loss.1} parent=0 // pred_fallthru
    _
  // Predicated region
  $region30: #{multi_dice_loss.1} parent=0 // pred_check
    _
  $region31: #{multi_dice_loss.1} parent=0 // pred_check_branch
    %209 = sbr.rel (0) target = $region33
  $region32: #{multi_dice_loss.1} parent=0 // pred_region
    _
  $region33: #{multi_dice_loss.1} parent=0 // pred_fallthru
    _
  // Predicated region
  $region34: #{multi_dice_loss.1} parent=0 // pred_check
    _
  $region35: #{multi_dice_loss.1} parent=0 // pred_check_branch
    %211 = sbr.rel (0) target = $region37
  $region36: #{multi_dice_loss.1} parent=0 // pred_region
    _
  $region37: #{multi_dice_loss.1} parent=0 // pred_fallthru
    _
  // Predicated region
  $region38: #{multi_dice_loss.1} parent=0 // pred_check
    _
  $region39: #{multi_dice_loss.1} parent=0 // pred_check_branch
    %213 = sbr.rel (0) target = $region41
  $region40: #{multi_dice_loss.1} parent=0 // pred_region
    _
  $region41: #{multi_dice_loss.1} parent=0 // pred_fallthru
    _

</llo_original>
